<compile_context>
chip_gen: v5e
topology: v5e:2x2
jax: 0.10.0
libtpu: 0.0.40
codegen_flags: <defaults>
</compile_context>

<pallas_src>
import functools

import jax
import jax.numpy as jnp
from jax.experimental import pallas as pl
from jax.experimental.pallas import tpu as pltpu


def _layernorm(x, gamma, beta, eps=1e-5):
    mu = jnp.mean(x, axis=-1, keepdims=True)
    var = jnp.mean((x - mu) ** 2, axis=-1, keepdims=True)
    return (x - mu) * jax.lax.rsqrt(var + eps) * gamma + beta


def _gelu_exact(x):
    # torch.nn.GELU default (approximate='none')
    return 0.5 * x * (1.0 + jax.lax.erf(x * (2.0 ** -0.5)))


def _bf16(x):
    return x.astype(jnp.bfloat16)


def token_transformer_kernel(x_ref,
                             n1w_ref, n1b_ref,
                             wqkv_ref,
                             wp_ref, bp_ref,
                             n2w_ref, n2b_ref,
                             w1_ref, b1_ref, w2_ref, b2_ref,
                             o_ref,
                             q_cache, k_cache, vf_cache, vb_cache,
                             *, in_dim, tq, nq_inner):
    p = pl.program_id(1)
    t = pl.program_id(2)

    # ---- fill the Q/K/V caches once per (batch, parallel-half) ------------
    @pl.when(t == 0)
    def _fill():
        xn = _layernorm(x_ref[...], n1w_ref[0], n1b_ref[0])          # (N, dim) f32
        qkv = jnp.dot(_bf16(xn), wqkv_ref[...],
                      preferred_element_type=jnp.float32)            # (N, 3*in_dim) f32
        # q columns already carry the softmax scale (folded on the host).
        q_cache[...] = qkv[:, :in_dim]                               # f32 (sliced later)
        k_cache[...] = _bf16(qkv[:, in_dim:2 * in_dim])              # bf16 MXU operand
        v = qkv[:, 2 * in_dim:]
        vf_cache[...] = v                                            # f32 (residual)
        vb_cache[...] = _bf16(v)                                     # bf16 MXU operand

    # ---- this query tile: slice the caches (no recomputation) --------------
    qstart = pl.multiple_of((p * nq_inner + t) * tq, tq)
    q_t = _bf16(q_cache[pl.ds(qstart, tq), :])                       # (tq, in_dim)
    v_t = vf_cache[pl.ds(qstart, tq), :]                             # (tq, in_dim) f32

    # ---- attention: contract last dims of q and k (flash-style) ------------
    s = jax.lax.dot_general(q_t, k_cache[...],
                            dimension_numbers=(((1,), (1,)), ((), ())),
                            preferred_element_type=jnp.float32)      # (tq, N) f32
    s = s - jnp.max(s, axis=-1, keepdims=True)
    e = jnp.exp(s)
    attn = e * pl.reciprocal(jnp.sum(e, axis=-1, keepdims=True), approx=True)

    a = jnp.dot(_bf16(attn), vb_cache[...],
                preferred_element_type=jnp.float32)                  # (tq, in_dim)
    a = jnp.dot(_bf16(a), wp_ref[...],
                preferred_element_type=jnp.float32) + bp_ref[0]
    x1 = v_t + a                                                     # residual with V

    # ---- norm2 + MLP + residual --------------------------------------------
    xn2 = _layernorm(x1, n2w_ref[0], n2b_ref[0])
    h = jnp.dot(_bf16(xn2), w1_ref[...],
                preferred_element_type=jnp.float32) + b1_ref[0]
    h = _gelu_exact(h)
    m = jnp.dot(_bf16(h), w2_ref[...],
                preferred_element_type=jnp.float32) + b2_ref[0]

    o_ref[...] = (x1 + m).astype(o_ref.dtype)


def token_transformer(x, params, *, num_heads=1, tq=None):
    assert num_heads == 1, (
        "reference module's reshape / v.squeeze(1) requires num_heads == 1")
    B, N, dim = x.shape
    in_dim = params["wq"].shape[1]
    hidden = params["w1"].shape[1]
    # Keep the reference quirk: scale uses dim // num_heads, NOT in_dim.
    scale = float((dim // num_heads) ** -0.5)

    if tq is None:
        if N <= 256:
            tq = N
        else:
            tq = next((c for c in (256, 128, 64, 32, 16, 8) if N % c == 0), N)
    assert N % tq == 0 and (tq % 8 == 0 or tq == N)
    nq = N // tq

    # v7x has 2 TensorCores: if B == 1 split the query tiles into 2 parallel
    # halves so both cores get work; each half fills its own K/V cache.
    par = 2 if (B == 1 and nq >= 2 and nq % 2 == 0) else 1
    nq_inner = nq // par

    # Fused QKV weight (dim, 3*in_dim); softmax scale baked into the q columns.
    # Matmul weights are bf16 (halves weight DMA, doubles MXU rate); biases
    # and LayerNorm params stay f32.
    wqkv = jnp.concatenate(
        [params["wq"] * scale, params["wk"], params["wv"]], axis=1
    ).astype(jnp.bfloat16)
    wp = params["wp"].astype(jnp.bfloat16)
    w1 = params["w1"].astype(jnp.bfloat16)
    w2 = params["w2"].astype(jnp.bfloat16)

    kernel = functools.partial(token_transformer_kernel,
                               in_dim=in_dim, tq=tq, nq_inner=nq_inner)

    def wspec(shape):
        return pl.BlockSpec(shape, lambda b, p, t: (0,) * len(shape))

    # ---- scheduler hints (updated for the cached-QKV structure) -------------
    w_bytes = 2 * (dim * 3 * in_dim + in_dim * in_dim + 2 * in_dim * hidden)
    flops = int(B * par * 2 * N * dim * 3 * in_dim            # fused QKV, once per (b, half)
                + B * N * (4 * N * in_dim                      # q@k^T and attn@v
                           + 2 * in_dim * in_dim               # proj
                           + 4 * in_dim * hidden))             # mlp fc1 + fc2
    transcendentals = int(B * N * (N + hidden))
    bytes_accessed = int(4 * B * par * N * dim                 # x (read once per b, half)
                         + 4 * B * N * in_dim                  # output
                         + w_bytes                             # bf16 weights
                         + 4 * (2 * dim + 5 * in_dim + hidden))

    # VMEM footprint (x block double-buffered, caches, score tile, weights,
    # output/intermediates) with 2x headroom, clamped to v7x's 64 MiB per TC.
    vmem_need = (2 * N * dim * 4
                 + N * in_dim * (4 + 2 + 4 + 2)
                 + 4 * tq * N * 4
                 + 2 * w_bytes
                 + 8 * tq * max(in_dim, hidden) * 4
                 + (2 << 20))
    vmem_limit = int(min(max(2 * vmem_need, 8 << 20), 64 << 20))

    return pl.pallas_call(
        kernel,
        out_shape=jax.ShapeDtypeStruct((B, N, in_dim), jnp.float32),
        grid=(B, par, nq_inner),
        in_specs=[
            pl.BlockSpec((None, N, dim), lambda b, p, t: (b, 0, 0)),  # x (full seq)
            wspec((1, dim)),             # norm1 weight
            wspec((1, dim)),             # norm1 bias
            wspec((dim, 3 * in_dim)),    # fused Wqkv (q pre-scaled), bf16
            wspec((in_dim, in_dim)),     # Wproj, bf16
            wspec((1, in_dim)),          # bproj
            wspec((1, in_dim)),          # norm2 weight
            wspec((1, in_dim)),          # norm2 bias
            wspec((in_dim, hidden)),     # mlp fc1 W, bf16
            wspec((1, hidden)),          # mlp fc1 b
            wspec((hidden, in_dim)),     # mlp fc2 W, bf16
            wspec((1, in_dim)),          # mlp fc2 b
        ],
        out_specs=pl.BlockSpec((None, tq, in_dim),
                               lambda b, p, t: (b, p * nq_inner + t, 0)),
        scratch_shapes=[
            pltpu.VMEM((N, in_dim), jnp.float32),    # Q cache (f32, sliced per tile)
            pltpu.VMEM((N, in_dim), jnp.bfloat16),   # K cache (bf16 MXU operand)
            pltpu.VMEM((N, in_dim), jnp.float32),    # V cache (f32, residual)
            pltpu.VMEM((N, in_dim), jnp.bfloat16),   # V cache (bf16 MXU operand)
        ],
        compiler_params=pltpu.CompilerParams(
            dimension_semantics=("parallel", "parallel", "arbitrary"),
            vmem_limit_bytes=vmem_limit),
        cost_estimate=pl.CostEstimate(flops=flops,
                                      transcendentals=transcendentals,
                                      bytes_accessed=bytes_accessed),
    )(x,
      params["n1_w"], params["n1_b"],
      wqkv,
      wp, params["bp"],
      params["n2_w"], params["n2_b"],
      w1, params["b1"], w2, params["b2"])


# ---------------------------------------------------------------------------
# Pure-JAX reference (mirrors the PyTorch forward, eval mode) for verification
# ---------------------------------------------------------------------------
def token_transformer_ref(x, p, *, num_heads=1):
    B, N, dim = x.shape
    scale = (dim // num_heads) ** -0.5
    xn = _layernorm(x, p["n1_w"][0], p["n1_b"][0])
    q = xn @ p["wq"]
    k = xn @ p["wk"]
    v = xn @ p["wv"]
    attn = jax.nn.softmax(jnp.einsum("bnd,bmd->bnm", q, k) * scale, axis=-1)
    a = jnp.einsum("bnm,bmd->bnd", attn, v) @ p["wp"] + p["bp"][0]
    x1 = v + a
    xn2 = _layernorm(x1, p["n2_w"][0], p["n2_b"][0])
    h = _gelu_exact(xn2 @ p["w1"] + p["b1"][0])
    return x1 + (h @ p["w2"] + p["b2"][0])


def init_params(key, dim, in_dim, mlp_ratio=1.0):
    hidden = int(in_dim * mlp_ratio)
    ks = jax.random.split(key, 8)
    s = 0.02
    return {
        "n1_w": jnp.ones((1, dim), jnp.float32),
        "n1_b": jnp.zeros((1, dim), jnp.float32),
        "wq": s * jax.random.normal(ks[0], (dim, in_dim), jnp.float32),
        "wk": s * jax.random.normal(ks[1], (dim, in_dim), jnp.float32),
        "wv": s * jax.random.normal(ks[2], (dim, in_dim), jnp.float32),
        "wp": s * jax.random.normal(ks[3], (in_dim, in_dim), jnp.float32),
        "bp": s * jax.random.normal(ks[4], (1, in_dim), jnp.float32),
        "n2_w": jnp.ones((1, in_dim), jnp.float32),
        "n2_b": jnp.zeros((1, in_dim), jnp.float32),
        "w1": s * jax.random.normal(ks[5], (in_dim, hidden), jnp.float32),
        "b1": jnp.zeros((1, hidden), jnp.float32),
        "w2": s * jax.random.normal(ks[6], (hidden, in_dim), jnp.float32),
        "b2": s * jax.random.normal(ks[7], (1, in_dim), jnp.float32),
    }


if __name__ == "__main__":
    # Small shapes consistent with the module: B=2, sequence N=16, model
    # dim=32, in_dim=64, num_heads=1 (required by the reference module).
    # tq=8 -> 2 query tiles per batch element, so both the cache-fill path
    # (t == 0) and the cache-reuse path (t > 0) are exercised and checked.
    B, N, dim, in_dim = 2, 16, 32, 64
    key = jax.random.PRNGKey(0)
    kx, kp = jax.random.split(key)
    x = jax.random.normal(kx, (B, N, dim), jnp.float32)
    params = init_params(kp, dim, in_dim, mlp_ratio=1.0)

    out = jax.block_until_ready(token_transformer(x, params, num_heads=1, tq=8))
    ref = token_transformer_ref(x, params, num_heads=1)

    assert out.shape == (B, N, in_dim)
    max_err = float(jnp.max(jnp.abs(out - ref)))
    assert jnp.allclose(out, ref, atol=2e-2, rtol=2e-2), max_err

    print("KERNEL_OK")
</pallas_src>

<mosaic_0001>
module attributes {stable_mosaic.version = 11 : i64} {
  func.func @token_transformer_kernel(%arg0: i32, %arg1: i32, %arg2: i32, %arg3: memref<1x16x32xf32, #tpu.memory_space<vmem>>, %arg4: memref<1x32xf32, #tpu.memory_space<vmem>>, %arg5: memref<1x32xf32, #tpu.memory_space<vmem>>, %arg6: memref<32x192xbf16, #tpu.memory_space<vmem>>, %arg7: memref<64x64xbf16, #tpu.memory_space<vmem>>, %arg8: memref<1x64xf32, #tpu.memory_space<vmem>>, %arg9: memref<1x64xf32, #tpu.memory_space<vmem>>, %arg10: memref<1x64xf32, #tpu.memory_space<vmem>>, %arg11: memref<64x64xbf16, #tpu.memory_space<vmem>>, %arg12: memref<1x64xf32, #tpu.memory_space<vmem>>, %arg13: memref<64x64xbf16, #tpu.memory_space<vmem>>, %arg14: memref<1x64xf32, #tpu.memory_space<vmem>>, %arg15: memref<1x8x64xf32, #tpu.memory_space<vmem>>, %arg16: memref<16x64xf32, #tpu.memory_space<vmem>>, %arg17: memref<16x64xbf16, #tpu.memory_space<vmem>>, %arg18: memref<16x64xf32, #tpu.memory_space<vmem>>, %arg19: memref<16x64xbf16, #tpu.memory_space<vmem>>) attributes {dimension_semantics = [#tpu.dimension_semantics<parallel>, #tpu.dimension_semantics<parallel>, #tpu.dimension_semantics<arbitrary>], iteration_bounds = array<i64: 2, 1, 2>, scalar_prefetch = 0 : i64, scratch_operands = 4 : i64, tpu.core_type = #tpu.core_type<tc>, window_params = [{transform_indices = @transform_0, window_bounds = array<i64: 1, 16, 32>}, {pipeline_mode = #tpu.pipeline_mode<synchronous>, transform_indices = @transform_1, window_bounds = array<i64: 1, 32>}, {pipeline_mode = #tpu.pipeline_mode<synchronous>, transform_indices = @transform_2, window_bounds = array<i64: 1, 32>}, {pipeline_mode = #tpu.pipeline_mode<synchronous>, transform_indices = @transform_3, window_bounds = array<i64: 32, 192>}, {pipeline_mode = #tpu.pipeline_mode<synchronous>, transform_indices = @transform_4, window_bounds = array<i64: 64, 64>}, {pipeline_mode = #tpu.pipeline_mode<synchronous>, transform_indices = @transform_5, window_bounds = array<i64: 1, 64>}, {pipeline_mode = #tpu.pipeline_mode<synchronous>, transform_indices = @transform_6, window_bounds = array<i64: 1, 64>}, {pipeline_mode = #tpu.pipeline_mode<synchronous>, transform_indices = @transform_7, window_bounds = array<i64: 1, 64>}, {pipeline_mode = #tpu.pipeline_mode<synchronous>, transform_indices = @transform_8, window_bounds = array<i64: 64, 64>}, {pipeline_mode = #tpu.pipeline_mode<synchronous>, transform_indices = @transform_9, window_bounds = array<i64: 1, 64>}, {pipeline_mode = #tpu.pipeline_mode<synchronous>, transform_indices = @transform_10, window_bounds = array<i64: 64, 64>}, {pipeline_mode = #tpu.pipeline_mode<synchronous>, transform_indices = @transform_11, window_bounds = array<i64: 1, 64>}, {transform_indices = @transform_12, window_bounds = array<i64: 1, 8, 64>}]} {
    %c0_i32 = arith.constant 0 : i32
    %0 = arith.cmpi eq, %arg2, %c0_i32 : i32
    %1 = arith.extui %0 : i1 to i32
    %c0_i32_0 = arith.constant 0 : i32
    %2 = arith.cmpi ne, %1, %c0_i32_0 : i32
    scf.if %2 {
      %c0_39 = arith.constant 0 : index
      %c0_40 = arith.constant 0 : index
      %c0_41 = arith.constant 0 : index
      %92 = vector.load %arg3[%c0_39, %c0_40, %c0_41] : memref<1x16x32xf32, #tpu.memory_space<vmem>>, vector<1x16x32xf32>
      %93 = vector.shape_cast %92 : vector<1x16x32xf32> to vector<16x32xf32>
      %c0_42 = arith.constant 0 : index
      %c0_43 = arith.constant 0 : index
      %94 = vector.load %arg4[%c0_42, %c0_43] : memref<1x32xf32, #tpu.memory_space<vmem>>, vector<1x32xf32>
      %95 = vector.shape_cast %94 : vector<1x32xf32> to vector<32xf32>
      %c0_44 = arith.constant 0 : index
      %c0_45 = arith.constant 0 : index
      %96 = vector.load %arg5[%c0_44, %c0_45] : memref<1x32xf32, #tpu.memory_space<vmem>>, vector<1x32xf32>
      %97 = vector.shape_cast %96 : vector<1x32xf32> to vector<32xf32>
      %cst_46 = arith.constant dense<0.000000e+00> : vector<16xf32>
      %98 = vector.multi_reduction <add>, %93, %cst_46 [1] : vector<16x32xf32> to vector<16xf32>
      %99 = vector.shape_cast %98 : vector<16xf32> to vector<16x1xf32>
      %cst_47 = arith.constant 3.200000e+01 : f32
      %100 = vector.broadcast %cst_47 : f32 to vector<16x1xf32>
      %101 = arith.divf %99, %100 : vector<16x1xf32>
      %102 = vector.broadcast %101 : vector<16x1xf32> to vector<16x32xf32>
      %103 = arith.subf %93, %102 : vector<16x32xf32>
      %104 = arith.mulf %103, %103 : vector<16x32xf32>
      %cst_48 = arith.constant dense<0.000000e+00> : vector<16xf32>
      %105 = vector.multi_reduction <add>, %104, %cst_48 [1] : vector<16x32xf32> to vector<16xf32>
      %106 = vector.shape_cast %105 : vector<16xf32> to vector<16x1xf32>
      %cst_49 = arith.constant 3.200000e+01 : f32
      %107 = vector.broadcast %cst_49 : f32 to vector<16x1xf32>
      %108 = arith.divf %106, %107 : vector<16x1xf32>
      %109 = vector.broadcast %101 : vector<16x1xf32> to vector<16x32xf32>
      %110 = arith.subf %93, %109 : vector<16x32xf32>
      %cst_50 = arith.constant 9.99999974E-6 : f32
      %111 = vector.broadcast %cst_50 : f32 to vector<16x1xf32>
      %112 = arith.addf %108, %111 : vector<16x1xf32>
      %113 = math.rsqrt %112 : vector<16x1xf32>
      %114 = vector.broadcast %113 : vector<16x1xf32> to vector<16x32xf32>
      %115 = arith.mulf %110, %114 : vector<16x32xf32>
      %116 = vector.shape_cast %95 : vector<32xf32> to vector<1x32xf32>
      %117 = vector.broadcast %116 : vector<1x32xf32> to vector<16x32xf32>
      %118 = arith.mulf %115, %117 : vector<16x32xf32>
      %119 = vector.shape_cast %97 : vector<32xf32> to vector<1x32xf32>
      %120 = vector.broadcast %119 : vector<1x32xf32> to vector<16x32xf32>
      %121 = arith.addf %118, %120 : vector<16x32xf32>
      %122 = arith.truncf %121 : vector<16x32xf32> to vector<16x32xbf16>
      %c0_51 = arith.constant 0 : index
      %c0_52 = arith.constant 0 : index
      %123 = vector.load %arg6[%c0_51, %c0_52] : memref<32x192xbf16, #tpu.memory_space<vmem>>, vector<32x192xbf16>
      %cst_53 = arith.constant dense<0.000000e+00> : vector<16x192xf32>
      %124 = tpu.matmul %122, %123, %cst_53 {dimension_numbers = #tpu.dot_dimension_numbers<[1], [0], [0], [1], [0, 0, 1, 1], [], []>} : vector<16x32xbf16>, vector<32x192xbf16>, vector<16x192xf32> -> vector<16x192xf32>
      %125 = vector.extract_strided_slice %124 {offsets = [0, 0], sizes = [16, 64], strides = [1, 1]} : vector<16x192xf32> to vector<16x64xf32>
      %c0_54 = arith.constant 0 : index
      %c0_55 = arith.constant 0 : index
      %126 = vector.load %arg16[%c0_54, %c0_55] : memref<16x64xf32, #tpu.memory_space<vmem>>, vector<16x64xf32>
      tpu.vector_store %arg16[%c0_54, %c0_55], %125 {strides = array<i32>} : memref<16x64xf32, #tpu.memory_space<vmem>>, vector<16x64xf32>,
      %127 = vector.extract_strided_slice %124 {offsets = [0, 64], sizes = [16, 64], strides = [1, 1]} : vector<16x192xf32> to vector<16x64xf32>
      %128 = arith.truncf %127 : vector<16x64xf32> to vector<16x64xbf16>
      %c0_56 = arith.constant 0 : index
      %c0_57 = arith.constant 0 : index
      %129 = vector.load %arg17[%c0_56, %c0_57] : memref<16x64xbf16, #tpu.memory_space<vmem>>, vector<16x64xbf16>
      tpu.vector_store %arg17[%c0_56, %c0_57], %128 {strides = array<i32>} : memref<16x64xbf16, #tpu.memory_space<vmem>>, vector<16x64xbf16>,
      %130 = vector.extract_strided_slice %124 {offsets = [0, 128], sizes = [16, 64], strides = [1, 1]} : vector<16x192xf32> to vector<16x64xf32>
      %c0_58 = arith.constant 0 : index
      %c0_59 = arith.constant 0 : index
      %131 = vector.load %arg18[%c0_58, %c0_59] : memref<16x64xf32, #tpu.memory_space<vmem>>, vector<16x64xf32>
      tpu.vector_store %arg18[%c0_58, %c0_59], %130 {strides = array<i32>} : memref<16x64xf32, #tpu.memory_space<vmem>>, vector<16x64xf32>,
      %132 = arith.truncf %130 : vector<16x64xf32> to vector<16x64xbf16>
      %c0_60 = arith.constant 0 : index
      %c0_61 = arith.constant 0 : index
      %133 = vector.load %arg19[%c0_60, %c0_61] : memref<16x64xbf16, #tpu.memory_space<vmem>>, vector<16x64xbf16>
      tpu.vector_store %arg19[%c0_60, %c0_61], %132 {strides = array<i32>} : memref<16x64xbf16, #tpu.memory_space<vmem>>, vector<16x64xbf16>,
    } else {
    }
    %c2_i32 = arith.constant 2 : i32
    %3 = arith.muli %arg1, %c2_i32 : i32
    %4 = arith.addi %3, %arg2 : i32
    %c8_i32 = arith.constant 8 : i32
    %5 = arith.muli %4, %c8_i32 : i32
    %6 = tpu.assume_multiple %5, 8 : i32
    %7 = arith.index_cast %6 : i32 to index
    %c0 = arith.constant 0 : index
    %8 = vector.load %arg16[%7, %c0] : memref<16x64xf32, #tpu.memory_space<vmem>>, vector<8x64xf32>
    %9 = arith.truncf %8 : vector<8x64xf32> to vector<8x64xbf16>
    %10 = arith.index_cast %6 : i32 to index
    %c0_1 = arith.constant 0 : index
    %11 = vector.load %arg18[%10, %c0_1] : memref<16x64xf32, #tpu.memory_space<vmem>>, vector<8x64xf32>
    %c0_2 = arith.constant 0 : index
    %c0_3 = arith.constant 0 : index
    %12 = vector.load %arg17[%c0_2, %c0_3] : memref<16x64xbf16, #tpu.memory_space<vmem>>, vector<16x64xbf16>
    %cst = arith.constant dense<0.000000e+00> : vector<8x16xf32>
    %13 = tpu.matmul %9, %12, %cst {dimension_numbers = #tpu.dot_dimension_numbers<[1], [1], [0], [0], [0, 0, 1, 0], [], []>} : vector<8x64xbf16>, vector<16x64xbf16>, vector<8x16xf32> -> vector<8x16xf32>
    %cst_4 = arith.constant dense<0xFF800000> : vector<8xf32>
    %14 = vector.multi_reduction <maximumf>, %13, %cst_4 [1] : vector<8x16xf32> to vector<8xf32>
    %15 = vector.shape_cast %14 : vector<8xf32> to vector<8x1xf32>
    %16 = vector.broadcast %15 : vector<8x1xf32> to vector<8x16xf32>
    %17 = arith.subf %13, %16 : vector<8x16xf32>
    %18 = math.exp %17 : vector<8x16xf32>
    %cst_5 = arith.constant dense<0.000000e+00> : vector<8xf32>
    %19 = vector.multi_reduction <add>, %18, %cst_5 [1] : vector<8x16xf32> to vector<8xf32>
    %20 = vector.shape_cast %19 : vector<8xf32> to vector<8x1xf32>
    %21 = tpu.reciprocal %20 {approx = true} : vector<8x1xf32> -> vector<8x1xf32>
    %22 = vector.broadcast %21 : vector<8x1xf32> to vector<8x16xf32>
    %23 = arith.mulf %18, %22 : vector<8x16xf32>
    %24 = arith.truncf %23 : vector<8x16xf32> to vector<8x16xbf16>
    %c0_6 = arith.constant 0 : index
    %c0_7 = arith.constant 0 : index
    %25 = vector.load %arg19[%c0_6, %c0_7] : memref<16x64xbf16, #tpu.memory_space<vmem>>, vector<16x64xbf16>
    %cst_8 = arith.constant dense<0.000000e+00> : vector<8x64xf32>
    %26 = tpu.matmul %24, %25, %cst_8 {dimension_numbers = #tpu.dot_dimension_numbers<[1], [0], [0], [1], [0, 0, 1, 1], [], []>} : vector<8x16xbf16>, vector<16x64xbf16>, vector<8x64xf32> -> vector<8x64xf32>
    %27 = arith.truncf %26 : vector<8x64xf32> to vector<8x64xbf16>
    %c0_9 = arith.constant 0 : index
    %c0_10 = arith.constant 0 : index
    %28 = vector.load %arg7[%c0_9, %c0_10] : memref<64x64xbf16, #tpu.memory_space<vmem>>, vector<64x64xbf16>
    %cst_11 = arith.constant dense<0.000000e+00> : vector<8x64xf32>
    %29 = tpu.matmul %27, %28, %cst_11 {dimension_numbers = #tpu.dot_dimension_numbers<[1], [0], [0], [1], [0, 0, 1, 1], [], []>} : vector<8x64xbf16>, vector<64x64xbf16>, vector<8x64xf32> -> vector<8x64xf32>
    %c0_12 = arith.constant 0 : index
    %c0_13 = arith.constant 0 : index
    %30 = vector.load %arg8[%c0_12, %c0_13] : memref<1x64xf32, #tpu.memory_space<vmem>>, vector<1x64xf32>
    %31 = vector.shape_cast %30 : vector<1x64xf32> to vector<64xf32>
    %32 = vector.shape_cast %31 : vector<64xf32> to vector<1x64xf32>
    %33 = vector.broadcast %32 : vector<1x64xf32> to vector<8x64xf32>
    %34 = arith.addf %29, %33 : vector<8x64xf32>
    %35 = arith.addf %11, %34 : vector<8x64xf32>
    %c0_14 = arith.constant 0 : index
    %c0_15 = arith.constant 0 : index
    %36 = vector.load %arg9[%c0_14, %c0_15] : memref<1x64xf32, #tpu.memory_space<vmem>>, vector<1x64xf32>
    %37 = vector.shape_cast %36 : vector<1x64xf32> to vector<64xf32>
    %c0_16 = arith.constant 0 : index
    %c0_17 = arith.constant 0 : index
    %38 = vector.load %arg10[%c0_16, %c0_17] : memref<1x64xf32, #tpu.memory_space<vmem>>, vector<1x64xf32>
    %39 = vector.shape_cast %38 : vector<1x64xf32> to vector<64xf32>
    %cst_18 = arith.constant dense<0.000000e+00> : vector<8xf32>
    %40 = vector.multi_reduction <add>, %35, %cst_18 [1] : vector<8x64xf32> to vector<8xf32>
    %41 = vector.shape_cast %40 : vector<8xf32> to vector<8x1xf32>
    %cst_19 = arith.constant 6.400000e+01 : f32
    %42 = vector.broadcast %cst_19 : f32 to vector<8x1xf32>
    %43 = arith.divf %41, %42 : vector<8x1xf32>
    %44 = vector.broadcast %43 : vector<8x1xf32> to vector<8x64xf32>
    %45 = arith.subf %35, %44 : vector<8x64xf32>
    %46 = arith.mulf %45, %45 : vector<8x64xf32>
    %cst_20 = arith.constant dense<0.000000e+00> : vector<8xf32>
    %47 = vector.multi_reduction <add>, %46, %cst_20 [1] : vector<8x64xf32> to vector<8xf32>
    %48 = vector.shape_cast %47 : vector<8xf32> to vector<8x1xf32>
    %cst_21 = arith.constant 6.400000e+01 : f32
    %49 = vector.broadcast %cst_21 : f32 to vector<8x1xf32>
    %50 = arith.divf %48, %49 : vector<8x1xf32>
    %51 = vector.broadcast %43 : vector<8x1xf32> to vector<8x64xf32>
    %52 = arith.subf %35, %51 : vector<8x64xf32>
    %cst_22 = arith.constant 9.99999974E-6 : f32
    %53 = vector.broadcast %cst_22 : f32 to vector<8x1xf32>
    %54 = arith.addf %50, %53 : vector<8x1xf32>
    %55 = math.rsqrt %54 : vector<8x1xf32>
    %56 = vector.broadcast %55 : vector<8x1xf32> to vector<8x64xf32>
    %57 = arith.mulf %52, %56 : vector<8x64xf32>
    %58 = vector.shape_cast %37 : vector<64xf32> to vector<1x64xf32>
    %59 = vector.broadcast %58 : vector<1x64xf32> to vector<8x64xf32>
    %60 = arith.mulf %57, %59 : vector<8x64xf32>
    %61 = vector.shape_cast %39 : vector<64xf32> to vector<1x64xf32>
    %62 = vector.broadcast %61 : vector<1x64xf32> to vector<8x64xf32>
    %63 = arith.addf %60, %62 : vector<8x64xf32>
    %64 = arith.truncf %63 : vector<8x64xf32> to vector<8x64xbf16>
    %c0_23 = arith.constant 0 : index
    %c0_24 = arith.constant 0 : index
    %65 = vector.load %arg11[%c0_23, %c0_24] : memref<64x64xbf16, #tpu.memory_space<vmem>>, vector<64x64xbf16>
    %cst_25 = arith.constant dense<0.000000e+00> : vector<8x64xf32>
    %66 = tpu.matmul %64, %65, %cst_25 {dimension_numbers = #tpu.dot_dimension_numbers<[1], [0], [0], [1], [0, 0, 1, 1], [], []>} : vector<8x64xbf16>, vector<64x64xbf16>, vector<8x64xf32> -> vector<8x64xf32>
    %c0_26 = arith.constant 0 : index
    %c0_27 = arith.constant 0 : index
    %67 = vector.load %arg12[%c0_26, %c0_27] : memref<1x64xf32, #tpu.memory_space<vmem>>, vector<1x64xf32>
    %68 = vector.shape_cast %67 : vector<1x64xf32> to vector<64xf32>
    %69 = vector.shape_cast %68 : vector<64xf32> to vector<1x64xf32>
    %70 = vector.broadcast %69 : vector<1x64xf32> to vector<8x64xf32>
    %71 = arith.addf %66, %70 : vector<8x64xf32>
    %cst_28 = arith.constant 5.000000e-01 : f32
    %72 = vector.broadcast %cst_28 : f32 to vector<8x64xf32>
    %73 = arith.mulf %72, %71 : vector<8x64xf32>
    %cst_29 = arith.constant 0.707106769 : f32
    %74 = vector.broadcast %cst_29 : f32 to vector<8x64xf32>
    %75 = arith.mulf %71, %74 : vector<8x64xf32>
    %76 = math.erf %75 : vector<8x64xf32>
    %cst_30 = arith.constant 1.000000e+00 : f32
    %77 = vector.broadcast %cst_30 : f32 to vector<8x64xf32>
    %78 = arith.addf %77, %76 : vector<8x64xf32>
    %79 = arith.mulf %73, %78 : vector<8x64xf32>
    %80 = arith.truncf %79 : vector<8x64xf32> to vector<8x64xbf16>
    %c0_31 = arith.constant 0 : index
    %c0_32 = arith.constant 0 : index
    %81 = vector.load %arg13[%c0_31, %c0_32] : memref<64x64xbf16, #tpu.memory_space<vmem>>, vector<64x64xbf16>
    %cst_33 = arith.constant dense<0.000000e+00> : vector<8x64xf32>
    %82 = tpu.matmul %80, %81, %cst_33 {dimension_numbers = #tpu.dot_dimension_numbers<[1], [0], [0], [1], [0, 0, 1, 1], [], []>} : vector<8x64xbf16>, vector<64x64xbf16>, vector<8x64xf32> -> vector<8x64xf32>
    %c0_34 = arith.constant 0 : index
    %c0_35 = arith.constant 0 : index
    %83 = vector.load %arg14[%c0_34, %c0_35] : memref<1x64xf32, #tpu.memory_space<vmem>>, vector<1x64xf32>
    %84 = vector.shape_cast %83 : vector<1x64xf32> to vector<64xf32>
    %85 = vector.shape_cast %84 : vector<64xf32> to vector<1x64xf32>
    %86 = vector.broadcast %85 : vector<1x64xf32> to vector<8x64xf32>
    %87 = arith.addf %82, %86 : vector<8x64xf32>
    %88 = arith.addf %35, %87 : vector<8x64xf32>
    %c0_36 = arith.constant 0 : index
    %c0_37 = arith.constant 0 : index
    %c0_38 = arith.constant 0 : index
    %89 = vector.load %arg15[%c0_36, %c0_37, %c0_38] : memref<1x8x64xf32, #tpu.memory_space<vmem>>, vector<1x8x64xf32>
    %90 = vector.shape_cast %89 : vector<1x8x64xf32> to vector<8x64xf32>
    %91 = vector.shape_cast %88 : vector<8x64xf32> to vector<1x8x64xf32>
    tpu.vector_store %arg15[%c0_36, %c0_37, %c0_38], %91 {strides = array<i32>} : memref<1x8x64xf32, #tpu.memory_space<vmem>>, vector<1x8x64xf32>,
    return
  }
  func.func @transform_0(%arg0: i32, %arg1: i32, %arg2: i32) -> (i32, i32, i32) {
    %c0_i32 = arith.constant 0 : i32
    %c0_i32_0 = arith.constant 0 : i32
    %c0_i32_1 = arith.constant 0 : i32
    return %arg0, %c0_i32, %c0_i32_0 : i32, i32, i32
  }
  func.func @transform_1(%arg0: i32, %arg1: i32, %arg2: i32) -> (i32, i32) {
    %c0_i32 = arith.constant 0 : i32
    %c0_i32_0 = arith.constant 0 : i32
    %c0_i32_1 = arith.constant 0 : i32
    return %c0_i32, %c0_i32_0 : i32, i32
  }
  func.func @transform_2(%arg0: i32, %arg1: i32, %arg2: i32) -> (i32, i32) {
    %c0_i32 = arith.constant 0 : i32
    %c0_i32_0 = arith.constant 0 : i32
    %c0_i32_1 = arith.constant 0 : i32
    return %c0_i32, %c0_i32_0 : i32, i32
  }
  func.func @transform_3(%arg0: i32, %arg1: i32, %arg2: i32) -> (i32, i32) {
    %c0_i32 = arith.constant 0 : i32
    %c0_i32_0 = arith.constant 0 : i32
    %c0_i32_1 = arith.constant 0 : i32
    return %c0_i32, %c0_i32_0 : i32, i32
  }
  func.func @transform_4(%arg0: i32, %arg1: i32, %arg2: i32) -> (i32, i32) {
    %c0_i32 = arith.constant 0 : i32
    %c0_i32_0 = arith.constant 0 : i32
    %c0_i32_1 = arith.constant 0 : i32
    return %c0_i32, %c0_i32_0 : i32, i32
  }
  func.func @transform_5(%arg0: i32, %arg1: i32, %arg2: i32) -> (i32, i32) {
    %c0_i32 = arith.constant 0 : i32
    %c0_i32_0 = arith.constant 0 : i32
    %c0_i32_1 = arith.constant 0 : i32
    return %c0_i32, %c0_i32_0 : i32, i32
  }
  func.func @transform_6(%arg0: i32, %arg1: i32, %arg2: i32) -> (i32, i32) {
    %c0_i32 = arith.constant 0 : i32
    %c0_i32_0 = arith.constant 0 : i32
    %c0_i32_1 = arith.constant 0 : i32
    return %c0_i32, %c0_i32_0 : i32, i32
  }
  func.func @transform_7(%arg0: i32, %arg1: i32, %arg2: i32) -> (i32, i32) {
    %c0_i32 = arith.constant 0 : i32
    %c0_i32_0 = arith.constant 0 : i32
    %c0_i32_1 = arith.constant 0 : i32
    return %c0_i32, %c0_i32_0 : i32, i32
  }
  func.func @transform_8(%arg0: i32, %arg1: i32, %arg2: i32) -> (i32, i32) {
    %c0_i32 = arith.constant 0 : i32
    %c0_i32_0 = arith.constant 0 : i32
    %c0_i32_1 = arith.constant 0 : i32
    return %c0_i32, %c0_i32_0 : i32, i32
  }
  func.func @transform_9(%arg0: i32, %arg1: i32, %arg2: i32) -> (i32, i32) {
    %c0_i32 = arith.constant 0 : i32
    %c0_i32_0 = arith.constant 0 : i32
    %c0_i32_1 = arith.constant 0 : i32
    return %c0_i32, %c0_i32_0 : i32, i32
  }
  func.func @transform_10(%arg0: i32, %arg1: i32, %arg2: i32) -> (i32, i32) {
    %c0_i32 = arith.constant 0 : i32
    %c0_i32_0 = arith.constant 0 : i32
    %c0_i32_1 = arith.constant 0 : i32
    return %c0_i32, %c0_i32_0 : i32, i32
  }
  func.func @transform_11(%arg0: i32, %arg1: i32, %arg2: i32) -> (i32, i32) {
    %c0_i32 = arith.constant 0 : i32
    %c0_i32_0 = arith.constant 0 : i32
    %c0_i32_1 = arith.constant 0 : i32
    return %c0_i32, %c0_i32_0 : i32, i32
  }
  func.func @transform_12(%arg0: i32, %arg1: i32, %arg2: i32) -> (i32, i32, i32) {
    %c2_i32 = arith.constant 2 : i32
    %0 = arith.muli %arg1, %c2_i32 : i32
    %1 = arith.addi %0, %arg2 : i32
    %c0_i32 = arith.constant 0 : i32
    %c0_i32_0 = arith.constant 0 : i32
    return %arg0, %1, %c0_i32 : i32, i32, i32
  }
}

</mosaic_0001>

<llo_original>
// kernel: tpu_custom_call.1
$region0: #{tpu_custom_call.1}
  #allocation0 [shape = 'u32[]', space=smem, size = 0x4, offset = 0x4, fixed_abs, tag = 'smem constant byte address 0x4 - core index']
  #allocation1 [shape = 'u32[72,128]{1,0:T(1,128)}', space=vmem, size = 0x9000, scoped, tag = 'internal scratch']
  #allocation2 [shape = 'f32[16,64]{1,0:T(8,128)}', space=vmem, size = 0x2000, scoped, tag = 'scratch operand']
  #allocation3 [shape = 'bf16[16,64]{1,0:T(8,128)(2,1)}', space=vmem, size = 0x1000, scoped, tag = 'scratch operand']
  #allocation4 [shape = 'f32[16,64]{1,0:T(8,128)}', space=vmem, size = 0x2000, scoped, tag = 'scratch operand']
  #allocation5 [shape = 'bf16[16,64]{1,0:T(8,128)(2,1)}', space=vmem, size = 0x1000, scoped, tag = 'scratch operand']
  %s0 = inlined_call_operand.hbm [shape: f32[2,16,32], index: 0, kind: input, shape index: {}]
  %s1 = inlined_call_operand.hbm [shape: f32[1,32], index: 1, kind: input, shape index: {}]
  %s2 = inlined_call_operand.vmem [shape: f32[1,32], index: 2, kind: input, shape index: {}]
  %s3 = inlined_call_operand.hbm [shape: bf16[32,192], index: 3, kind: input, shape index: {}]
  %s4 = inlined_call_operand.hbm [shape: bf16[64,64], index: 4, kind: input, shape index: {}]
  %s5 = inlined_call_operand.vmem [shape: f32[1,64], index: 5, kind: input, shape index: {}]
  %s6 = inlined_call_operand.vmem [shape: f32[1,64], index: 6, kind: input, shape index: {}]
  %s7 = inlined_call_operand.vmem [shape: f32[1,64], index: 7, kind: input, shape index: {}]
  %s8 = inlined_call_operand.hbm [shape: bf16[64,64], index: 8, kind: input, shape index: {}]
  %s9 = inlined_call_operand.vmem [shape: f32[1,64], index: 9, kind: input, shape index: {}]
  %s10 = inlined_call_operand.hbm [shape: bf16[64,64], index: 10, kind: input, shape index: {}]
  %s11 = inlined_call_operand.vmem [shape: f32[1,64], index: 11, kind: input, shape index: {}]
  %s12 = inlined_call_operand.hbm [shape: f32[2,16,64], index: 12, kind: output, shape index: {}]
  %s13 = sld [smem:[#allocation0]]
  $region109: #{tpu_custom_call.1} parent=0
    _
  %s15 = ssub.s32 1, %s13
  %s16 = scalar_select 0, %s15, %s13
  $region1: #{tpu_custom_call.1} parent=0
    #allocation6 [shape = 'u8[16384]{0}', space=vmem, size = 0x4000, scoped, tag = 'input window, operand 0']
    #allocation7 [shape = 's32[2]{0}', space=sflag, size = 0x8, scoped, tag = 'scoped memory for tpu_custom_call.1']
    #allocation8 [shape = 's32[2]{0}', space=sflag, size = 0x8, scoped, tag = 'scoped memory for tpu_custom_call.1']
    #allocation9 [shape = 'u8[512]{0}', space=vmem, size = 0x400, scoped, tag = 'input window, operand 1, single buffered']
    #allocation10 [shape = 's32[1]{0}', space=sflag, size = 0x4, scoped, tag = 'scoped memory for tpu_custom_call.1']
    #allocation11 [shape = 'u8[16384]{0}', space=vmem, size = 0x4000, scoped, tag = 'input window, operand 3, single buffered']
    #allocation12 [shape = 'u8[16384]{0}', space=vmem, size = 0x4000, scoped, tag = 'input window, operand 4, single buffered']
    #allocation13 [shape = 's32[1]{0}', space=sflag, size = 0x4, scoped, tag = 'scoped memory for tpu_custom_call.1']
    #allocation14 [shape = 'u8[16384]{0}', space=vmem, size = 0x4000, scoped, tag = 'input window, operand 8, single buffered']
    #allocation15 [shape = 'u8[16384]{0}', space=vmem, size = 0x4000, scoped, tag = 'input window, operand 10, single buffered']
    #allocation16 [shape = 's32[1]{0}', space=sflag, size = 0x4, scoped, tag = 'scoped memory for tpu_custom_call.1']
    #allocation17 [shape = 'u8[8192]{0}', space=vmem, size = 0x2000, scoped, tag = 'output window, operand 0']
    %17 = vsyncpa [#allocation7], 0
    %s18 = scalar_lea.sflag [#allocation7], 1
    %19 = vsyncpa %s18, 0
    %20 = vsyncpa [#allocation10], 0
    %21 = vsyncpa [#allocation13], 0
    %22 = vsyncpa [#allocation16], 0
    %23 = vsyncpa [#allocation8], 0
    %s24 = scalar_lea.sflag [#allocation8], 1
    %25 = vsyncpa %s24, 0
    loop: start=0, step=1, limit=6
    $region2: #{tpu_custom_call.1} parent=1 // loop_pre_header
      _
    $region3: #{tpu_custom_call.1} parent=1 // loop_header
      %s27 = sphi 0, %s31
      %p28 = scmp.ge.s32.totalorder %s27, 6
      %s34 = sphi 0, %s53
      %s35 = sphi 0, %s49
      %s36 = sphi 0, %s45
      %s37 = sphi 0, %s34
      %s38 = sphi 0, %s35
      %s39 = sphi 0, %s36
      %s40 = sphi 0, %s37
      %s41 = sphi 0, %s38
      %s42 = sphi 0, %s39
      %s56 = sphi 0, %s58
      %s59 = sphi 0, %s56
      %s60 = sphi 0, %s59
      %s76 = sphi 0, %s60
      %s80 = sphi 0, %s80
      %s82 = sphi 0, %s80
      %s83 = sphi 0, %s82
      %s97 = sphi 0, %s83
      %s101 = sphi 0, %s101
      %s103 = sphi 0, %s101
      %s104 = sphi 0, %s103
      %s118 = sphi 0, %s104
      %s122 = sphi 0, %s122
      %s124 = sphi 0, %s122
      %s125 = sphi 0, %s124
      %s139 = sphi 0, %s125
      %s143 = sphi 0, %s143
      %s145 = sphi 0, %s143
      %s146 = sphi 0, %s145
      %s160 = sphi 0, %s146
      %s164 = sphi 0, %s164
      %s166 = sphi 0, %s164
      %s167 = sphi 0, %s166
      %s181 = sphi 0, %s167
      %s185 = sphi 0, %s185
      %s187 = sphi 0, %s185
      %s188 = sphi 0, %s187
      %s202 = sphi 0, %s188
      %s206 = sphi 0, %s206
      %s208 = sphi 0, %s206
      %s209 = sphi 0, %s208
      %s223 = sphi 0, %s209
      %s227 = sphi 0, %s227
      %s229 = sphi 0, %s227
      %s230 = sphi 0, %s229
      %s244 = sphi 0, %s230
      %s248 = sphi 0, %s248
      %s250 = sphi 0, %s248
      %s251 = sphi 0, %s250
      %s265 = sphi 0, %s251
      %s269 = sphi 0, %s269
      %s271 = sphi 0, %s269
      %s272 = sphi 0, %s271
      %s286 = sphi 0, %s272
      %s290 = sphi 0, %s290
      %s292 = sphi 0, %s290
      %s293 = sphi 0, %s292
      %s307 = sphi 0, %s293
      %s319 = sphi 0, %s321
      %s322 = sphi 0, %s319
      %s323 = sphi 0, %s322
      %s339 = sphi 0, %s323
    $region4: #{tpu_custom_call.1} parent=1 // loop_header_branch
      %30 = sbr.rel (%p28) target = $region8
    $region5: #{tpu_custom_call.1} parent=1 // loop_body
      %s32 = ssub.s32 %s27, 1
      %s33 = ssub.s32 %s27, 2
      %s43 = sadd.s32 1, %s36
      %p44 = scmp.ge.s32.totalorder %s43, 2
      %s45 = scalar_select %p44, 0, %s43
      %s46 = sadd.s32 1, %s35
      %s47 = scalar_select %p44, %s46, %s35
      %p48 = scmp.ge.s32.totalorder %s47, 1
      %s49 = scalar_select %p48, 0, %s47
      %s50 = sadd.s32 1, %s34
      %s51 = scalar_select %p48, %s50, %s34
      %p52 = scmp.ge.s32.totalorder %s51, 2
      %s53 = scalar_select %p52, 0, %s51
      %s54 = ssub.s32 %s34, %s53
      %p55 = scmp.eq.s32.totalorder %s54, 0
      %s57 = sadd.s32 %s56, 1
      %s58 = scalar_select %p55, %s56, %s57
      %p61 = pneg %p55
      %p62 = scmp.eq.s32.totalorder %s27, 3
      %p63 = por %p61, %p62
      %p64 = scmp.ne.s32.totalorder %s56, %s59
      %p65 = scmp.eq.s32.totalorder %s27, 0
      %p66 = por %p64, %p65
      %p67 = scmp.ne.s32.totalorder %s56, %s59
      %p68 = scmp.eq.s32.totalorder %s32, 3
      %p69 = por %p67, %p68
      %p70 = scmp.ne.s32.totalorder %s59, %s60
      %p71 = scmp.eq.s32.totalorder %s32, 0
      %p72 = por %p70, %p71
      %p73 = scmp.ne.s32.totalorder %s59, %s60
      %p74 = scmp.eq.s32.totalorder %s33, 3
      %p75 = por %p73, %p74
      %p77 = scmp.ne.s32.totalorder %s60, %s76
      %p78 = scmp.eq.s32.totalorder %s33, 0
      %p79 = por %p77, %p78
      %s81 = sadd.s32 %s80, 1
      %p84 = scmp.eq.s32.totalorder %s27, 3
      %p85 = scmp.ne.s32.totalorder %s80, %s82
      %p86 = scmp.eq.s32.totalorder %s27, 0
      %p87 = por %p85, %p86
      %p88 = scmp.ne.s32.totalorder %s80, %s82
      %p89 = scmp.eq.s32.totalorder %s32, 3
      %p90 = por %p88, %p89
      %p91 = scmp.ne.s32.totalorder %s82, %s83
      %p92 = scmp.eq.s32.totalorder %s32, 0
      %p93 = por %p91, %p92
      %p94 = scmp.ne.s32.totalorder %s82, %s83
      %p95 = scmp.eq.s32.totalorder %s33, 3
      %p96 = por %p94, %p95
      %p98 = scmp.ne.s32.totalorder %s83, %s97
      %p99 = scmp.eq.s32.totalorder %s33, 0
      %p100 = por %p98, %p99
      %s102 = sadd.s32 %s101, 1
      %p105 = scmp.eq.s32.totalorder %s27, 3
      %p106 = scmp.ne.s32.totalorder %s101, %s103
      %p107 = scmp.eq.s32.totalorder %s27, 0
      %p108 = por %p106, %p107
      %p109 = scmp.ne.s32.totalorder %s101, %s103
      %p110 = scmp.eq.s32.totalorder %s32, 3
      %p111 = por %p109, %p110
      %p112 = scmp.ne.s32.totalorder %s103, %s104
      %p113 = scmp.eq.s32.totalorder %s32, 0
      %p114 = por %p112, %p113
      %p115 = scmp.ne.s32.totalorder %s103, %s104
      %p116 = scmp.eq.s32.totalorder %s33, 3
      %p117 = por %p115, %p116
      %p119 = scmp.ne.s32.totalorder %s104, %s118
      %p120 = scmp.eq.s32.totalorder %s33, 0
      %p121 = por %p119, %p120
      %s123 = sadd.s32 %s122, 1
      %p126 = scmp.eq.s32.totalorder %s27, 3
      %p127 = scmp.ne.s32.totalorder %s122, %s124
      %p128 = scmp.eq.s32.totalorder %s27, 0
      %p129 = por %p127, %p128
      %p130 = scmp.ne.s32.totalorder %s122, %s124
      %p131 = scmp.eq.s32.totalorder %s32, 3
      %p132 = por %p130, %p131
      %p133 = scmp.ne.s32.totalorder %s124, %s125
      %p134 = scmp.eq.s32.totalorder %s32, 0
      %p135 = por %p133, %p134
      %p136 = scmp.ne.s32.totalorder %s124, %s125
      %p137 = scmp.eq.s32.totalorder %s33, 3
      %p138 = por %p136, %p137
      %p140 = scmp.ne.s32.totalorder %s125, %s139
      %p141 = scmp.eq.s32.totalorder %s33, 0
      %p142 = por %p140, %p141
      %s144 = sadd.s32 %s143, 1
      %p147 = scmp.eq.s32.totalorder %s27, 3
      %p148 = scmp.ne.s32.totalorder %s143, %s145
      %p149 = scmp.eq.s32.totalorder %s27, 0
      %p150 = por %p148, %p149
      %p151 = scmp.ne.s32.totalorder %s143, %s145
      %p152 = scmp.eq.s32.totalorder %s32, 3
      %p153 = por %p151, %p152
      %p154 = scmp.ne.s32.totalorder %s145, %s146
      %p155 = scmp.eq.s32.totalorder %s32, 0
      %p156 = por %p154, %p155
      %p157 = scmp.ne.s32.totalorder %s145, %s146
      %p158 = scmp.eq.s32.totalorder %s33, 3
      %p159 = por %p157, %p158
      %p161 = scmp.ne.s32.totalorder %s146, %s160
      %p162 = scmp.eq.s32.totalorder %s33, 0
      %p163 = por %p161, %p162
      %s165 = sadd.s32 %s164, 1
      %p168 = scmp.eq.s32.totalorder %s27, 3
      %p169 = scmp.ne.s32.totalorder %s164, %s166
      %p170 = scmp.eq.s32.totalorder %s27, 0
      %p171 = por %p169, %p170
      %p172 = scmp.ne.s32.totalorder %s164, %s166
      %p173 = scmp.eq.s32.totalorder %s32, 3
      %p174 = por %p172, %p173
      %p175 = scmp.ne.s32.totalorder %s166, %s167
      %p176 = scmp.eq.s32.totalorder %s32, 0
      %p177 = por %p175, %p176
      %p178 = scmp.ne.s32.totalorder %s166, %s167
      %p179 = scmp.eq.s32.totalorder %s33, 3
      %p180 = por %p178, %p179
      %p182 = scmp.ne.s32.totalorder %s167, %s181
      %p183 = scmp.eq.s32.totalorder %s33, 0
      %p184 = por %p182, %p183
      %s186 = sadd.s32 %s185, 1
      %p189 = scmp.eq.s32.totalorder %s27, 3
      %p190 = scmp.ne.s32.totalorder %s185, %s187
      %p191 = scmp.eq.s32.totalorder %s27, 0
      %p192 = por %p190, %p191
      %p193 = scmp.ne.s32.totalorder %s185, %s187
      %p194 = scmp.eq.s32.totalorder %s32, 3
      %p195 = por %p193, %p194
      %p196 = scmp.ne.s32.totalorder %s187, %s188
      %p197 = scmp.eq.s32.totalorder %s32, 0
      %p198 = por %p196, %p197
      %p199 = scmp.ne.s32.totalorder %s187, %s188
      %p200 = scmp.eq.s32.totalorder %s33, 3
      %p201 = por %p199, %p200
      %p203 = scmp.ne.s32.totalorder %s188, %s202
      %p204 = scmp.eq.s32.totalorder %s33, 0
      %p205 = por %p203, %p204
      %s207 = sadd.s32 %s206, 1
      %p210 = scmp.eq.s32.totalorder %s27, 3
      %p211 = scmp.ne.s32.totalorder %s206, %s208
      %p212 = scmp.eq.s32.totalorder %s27, 0
      %p213 = por %p211, %p212
      %p214 = scmp.ne.s32.totalorder %s206, %s208
      %p215 = scmp.eq.s32.totalorder %s32, 3
      %p216 = por %p214, %p215
      %p217 = scmp.ne.s32.totalorder %s208, %s209
      %p218 = scmp.eq.s32.totalorder %s32, 0
      %p219 = por %p217, %p218
      %p220 = scmp.ne.s32.totalorder %s208, %s209
      %p221 = scmp.eq.s32.totalorder %s33, 3
      %p222 = por %p220, %p221
      %p224 = scmp.ne.s32.totalorder %s209, %s223
      %p225 = scmp.eq.s32.totalorder %s33, 0
      %p226 = por %p224, %p225
      %s228 = sadd.s32 %s227, 1
      %p231 = scmp.eq.s32.totalorder %s27, 3
      %p232 = scmp.ne.s32.totalorder %s227, %s229
      %p233 = scmp.eq.s32.totalorder %s27, 0
      %p234 = por %p232, %p233
      %p235 = scmp.ne.s32.totalorder %s227, %s229
      %p236 = scmp.eq.s32.totalorder %s32, 3
      %p237 = por %p235, %p236
      %p238 = scmp.ne.s32.totalorder %s229, %s230
      %p239 = scmp.eq.s32.totalorder %s32, 0
      %p240 = por %p238, %p239
      %p241 = scmp.ne.s32.totalorder %s229, %s230
      %p242 = scmp.eq.s32.totalorder %s33, 3
      %p243 = por %p241, %p242
      %p245 = scmp.ne.s32.totalorder %s230, %s244
      %p246 = scmp.eq.s32.totalorder %s33, 0
      %p247 = por %p245, %p246
      %s249 = sadd.s32 %s248, 1
      %p252 = scmp.eq.s32.totalorder %s27, 3
      %p253 = scmp.ne.s32.totalorder %s248, %s250
      %p254 = scmp.eq.s32.totalorder %s27, 0
      %p255 = por %p253, %p254
      %p256 = scmp.ne.s32.totalorder %s248, %s250
      %p257 = scmp.eq.s32.totalorder %s32, 3
      %p258 = por %p256, %p257
      %p259 = scmp.ne.s32.totalorder %s250, %s251
      %p260 = scmp.eq.s32.totalorder %s32, 0
      %p261 = por %p259, %p260
      %p262 = scmp.ne.s32.totalorder %s250, %s251
      %p263 = scmp.eq.s32.totalorder %s33, 3
      %p264 = por %p262, %p263
      %p266 = scmp.ne.s32.totalorder %s251, %s265
      %p267 = scmp.eq.s32.totalorder %s33, 0
      %p268 = por %p266, %p267
      %s270 = sadd.s32 %s269, 1
      %p273 = scmp.eq.s32.totalorder %s27, 3
      %p274 = scmp.ne.s32.totalorder %s269, %s271
      %p275 = scmp.eq.s32.totalorder %s27, 0
      %p276 = por %p274, %p275
      %p277 = scmp.ne.s32.totalorder %s269, %s271
      %p278 = scmp.eq.s32.totalorder %s32, 3
      %p279 = por %p277, %p278
      %p280 = scmp.ne.s32.totalorder %s271, %s272
      %p281 = scmp.eq.s32.totalorder %s32, 0
      %p282 = por %p280, %p281
      %p283 = scmp.ne.s32.totalorder %s271, %s272
      %p284 = scmp.eq.s32.totalorder %s33, 3
      %p285 = por %p283, %p284
      %p287 = scmp.ne.s32.totalorder %s272, %s286
      %p288 = scmp.eq.s32.totalorder %s33, 0
      %p289 = por %p287, %p288
      %s291 = sadd.s32 %s290, 1
      %p294 = scmp.eq.s32.totalorder %s27, 3
      %p295 = scmp.ne.s32.totalorder %s290, %s292
      %p296 = scmp.eq.s32.totalorder %s27, 0
      %p297 = por %p295, %p296
      %p298 = scmp.ne.s32.totalorder %s290, %s292
      %p299 = scmp.eq.s32.totalorder %s32, 3
      %p300 = por %p298, %p299
      %p301 = scmp.ne.s32.totalorder %s292, %s293
      %p302 = scmp.eq.s32.totalorder %s32, 0
      %p303 = por %p301, %p302
      %p304 = scmp.ne.s32.totalorder %s292, %s293
      %p305 = scmp.eq.s32.totalorder %s33, 3
      %p306 = por %p304, %p305
      %p308 = scmp.ne.s32.totalorder %s293, %s307
      %p309 = scmp.eq.s32.totalorder %s33, 0
      %p310 = por %p308, %p309
      %s311 = smul.u32 %s35, 2
      %s312 = sadd.s32 %s311, %s36
      %s313 = smul.u32 %s49, 2
      %s314 = sadd.s32 %s313, %s45
      %s315 = ssub.s32 %s34, %s53
      %s316 = ssub.s32 %s312, %s314
      %s317 = sor.u32 %s315, %s316
      %p318 = scmp.eq.s32.totalorder %s317, 0
      %s320 = sadd.s32 %s319, 1
      %s321 = scalar_select %p318, %s319, %s320
      %p324 = pneg %p318
      %p325 = scmp.eq.s32.totalorder %s27, 3
      %p326 = por %p324, %p325
      %p327 = scmp.ne.s32.totalorder %s319, %s322
      %p328 = scmp.eq.s32.totalorder %s27, 0
      %p329 = por %p327, %p328
      %p330 = scmp.ne.s32.totalorder %s319, %s322
      %p331 = scmp.eq.s32.totalorder %s32, 3
      %p332 = por %p330, %p331
      %p333 = scmp.ne.s32.totalorder %s322, %s323
      %p334 = scmp.eq.s32.totalorder %s32, 0
      %p335 = por %p333, %p334
      %p336 = scmp.ne.s32.totalorder %s322, %s323
      %p337 = scmp.eq.s32.totalorder %s33, 3
      %p338 = por %p336, %p337
      %p340 = scmp.ne.s32.totalorder %s323, %s339
      %p341 = scmp.eq.s32.totalorder %s33, 0
      %p342 = por %p340, %p341
      %p343 = scmp.le.s32.totalorder 1, %s27
      %p344 = scmp.lt.s32.totalorder %s27, 5
      %p345 = pnand %p343, %p344
      %p346 = pneg %p345
      // Predicated region
      $region9: #{tpu_custom_call.1} parent=5 // pred_check
        _
      $region10: #{tpu_custom_call.1} parent=5 // pred_check_branch
        %348 = sbr.rel (%p345) target = $region12
      $region11: #{tpu_custom_call.1} parent=5 // pred_region
        %s349 = ssub.s32 %s27, 1
        // Predicated region
        $region13: #{tpu_custom_call.1} parent=11 // pred_check
          %p350 = pneg %p93
        $region14: #{tpu_custom_call.1} parent=11 // pred_check_branch
          %352 = sbr.rel (%p350) target = $region16
        $region15: #{tpu_custom_call.1} parent=11 // pred_region
          %354 = vsyncadd [#allocation10], 0
          %s356 = sshll.u32 %s1, 4
          %s357 = int_to_ptr.hbm [resolvable:$true] %s356
          %s358 = sshll.u32 [#allocation9], 4
          %s359 = int_to_ptr.vmem [resolvable:$true] %s358
          %361 = dma.hbm_to_vmem [thread:$0]  %s357, 16, %s359, [#allocation10]
        $region16: #{tpu_custom_call.1} parent=11 // pred_fallthru
          _
        // Predicated region
        $region17: #{tpu_custom_call.1} parent=11 // pred_check
          %p362 = pneg %p114
        $region18: #{tpu_custom_call.1} parent=11 // pred_check_branch
          %364 = sbr.rel (%p362) target = $region20
        $region19: #{tpu_custom_call.1} parent=11 // pred_region
          _
        $region20: #{tpu_custom_call.1} parent=11 // pred_fallthru
          _
        // Predicated region
        $region21: #{tpu_custom_call.1} parent=11 // pred_check
          %p365 = pneg %p135
        $region22: #{tpu_custom_call.1} parent=11 // pred_check_branch
          %367 = sbr.rel (%p365) target = $region24
        $region23: #{tpu_custom_call.1} parent=11 // pred_region
          %369 = vsyncadd [#allocation10], 0
          %s370 = sshll.u32 %s3, 4
          %s371 = int_to_ptr.hbm [resolvable:$true] %s370
          %s372 = sshll.u32 [#allocation11], 4
          %s373 = int_to_ptr.vmem [resolvable:$true] %s372
          %378 = dma.hbm_to_vmem [thread:$0]  %s371, 512, %s373, [#allocation10], 128, 128, 8
        $region24: #{tpu_custom_call.1} parent=11 // pred_fallthru
          _
        // Predicated region
        $region25: #{tpu_custom_call.1} parent=11 // pred_check
          %p379 = pneg %p156
        $region26: #{tpu_custom_call.1} parent=11 // pred_check_branch
          %381 = sbr.rel (%p379) target = $region28
        $region27: #{tpu_custom_call.1} parent=11 // pred_region
          %383 = vsyncadd [#allocation13], 0
          %s384 = sshll.u32 %s4, 4
          %s385 = int_to_ptr.hbm [resolvable:$true] %s384
          %s386 = sshll.u32 [#allocation12], 4
          %s387 = int_to_ptr.vmem [resolvable:$true] %s386
          %392 = dma.hbm_to_vmem [thread:$0]  %s385, 512, %s387, [#allocation13], 64, 64, 4
        $region28: #{tpu_custom_call.1} parent=11 // pred_fallthru
          _
        // Predicated region
        $region29: #{tpu_custom_call.1} parent=11 // pred_check
          %p393 = pneg %p177
        $region30: #{tpu_custom_call.1} parent=11 // pred_check_branch
          %395 = sbr.rel (%p393) target = $region32
        $region31: #{tpu_custom_call.1} parent=11 // pred_region
          _
        $region32: #{tpu_custom_call.1} parent=11 // pred_fallthru
          _
        // Predicated region
        $region33: #{tpu_custom_call.1} parent=11 // pred_check
          %p396 = pneg %p198
        $region34: #{tpu_custom_call.1} parent=11 // pred_check_branch
          %398 = sbr.rel (%p396) target = $region36
        $region35: #{tpu_custom_call.1} parent=11 // pred_region
          _
        $region36: #{tpu_custom_call.1} parent=11 // pred_fallthru
          _
        // Predicated region
        $region37: #{tpu_custom_call.1} parent=11 // pred_check
          %p399 = pneg %p219
        $region38: #{tpu_custom_call.1} parent=11 // pred_check_branch
          %401 = sbr.rel (%p399) target = $region40
        $region39: #{tpu_custom_call.1} parent=11 // pred_region
          _
        $region40: #{tpu_custom_call.1} parent=11 // pred_fallthru
          _
        // Predicated region
        $region41: #{tpu_custom_call.1} parent=11 // pred_check
          %p402 = pneg %p240
        $region42: #{tpu_custom_call.1} parent=11 // pred_check_branch
          %404 = sbr.rel (%p402) target = $region44
        $region43: #{tpu_custom_call.1} parent=11 // pred_region
          %406 = vsyncadd [#allocation13], 0
          %s407 = sshll.u32 %s8, 4
          %s408 = int_to_ptr.hbm [resolvable:$true] %s407
          %s409 = sshll.u32 [#allocation14], 4
          %s410 = int_to_ptr.vmem [resolvable:$true] %s409
          %415 = dma.hbm_to_vmem [thread:$0]  %s408, 512, %s410, [#allocation13], 64, 64, 4
        $region44: #{tpu_custom_call.1} parent=11 // pred_fallthru
          _
        // Predicated region
        $region45: #{tpu_custom_call.1} parent=11 // pred_check
          %p416 = pneg %p261
        $region46: #{tpu_custom_call.1} parent=11 // pred_check_branch
          %418 = sbr.rel (%p416) target = $region48
        $region47: #{tpu_custom_call.1} parent=11 // pred_region
          _
        $region48: #{tpu_custom_call.1} parent=11 // pred_fallthru
          _
        // Predicated region
        $region49: #{tpu_custom_call.1} parent=11 // pred_check
          %p419 = pneg %p282
        $region50: #{tpu_custom_call.1} parent=11 // pred_check_branch
          %421 = sbr.rel (%p419) target = $region52
        $region51: #{tpu_custom_call.1} parent=11 // pred_region
          %423 = vsyncadd [#allocation16], 0
          %s424 = sshll.u32 %s10, 4
          %s425 = int_to_ptr.hbm [resolvable:$true] %s424
          %s426 = sshll.u32 [#allocation15], 4
          %s427 = int_to_ptr.vmem [resolvable:$true] %s426
          %432 = dma.hbm_to_vmem [thread:$0]  %s425, 512, %s427, [#allocation16], 64, 64, 4
        $region52: #{tpu_custom_call.1} parent=11 // pred_fallthru
          _
        // Predicated region
        $region53: #{tpu_custom_call.1} parent=11 // pred_check
          %p433 = pneg %p303
        $region54: #{tpu_custom_call.1} parent=11 // pred_check_branch
          %435 = sbr.rel (%p433) target = $region56
        $region55: #{tpu_custom_call.1} parent=11 // pred_region
          _
        $region56: #{tpu_custom_call.1} parent=11 // pred_fallthru
          _
      $region12: #{tpu_custom_call.1} parent=5 // pred_fallthru
        _
      %p436 = scmp.lt.s32.totalorder %s27, 4
      // Predicated region
      $region57: #{tpu_custom_call.1} parent=5 // pred_check
        %p437 = pneg %p436
      $region58: #{tpu_custom_call.1} parent=5 // pred_check_branch
        %439 = sbr.rel (%p437) target = $region60
      $region59: #{tpu_custom_call.1} parent=5 // pred_region
        // Predicated region
        $region61: #{tpu_custom_call.1} parent=59 // pred_check
          %p440 = pneg %p66
        $region62: #{tpu_custom_call.1} parent=59 // pred_check_branch
          %442 = sbr.rel (%p440) target = $region64
        $region63: #{tpu_custom_call.1} parent=59 // pred_region
          %s443 = sand.u32 %s56, 1
          %s444 = scalar_lea.sflag [#allocation7], %s443
          %s445 = sand.u32 %s56, 1
          %s446 = smul.addr %s445, 16
          %s447 = scalar_lea.vmem [#allocation6], %s446
          %449 = vsyncadd %s444, 0
          %s450 = smul.addr %s34, 2
          %s451 = smul.addr %s450, 8
          %s452 = scalar_lea.hbm %s0, %s451
          %s453 = sshll.u32 %s452, 4
          %s454 = int_to_ptr.hbm [resolvable:$true] %s453
          %s455 = sshll.u32 %s447, 4
          %s456 = int_to_ptr.vmem [resolvable:$true] %s455
          %461 = dma.hbm_to_vmem [thread:$0]  %s454, 256, %s456, %s444, 128, 128, 8
        $region64: #{tpu_custom_call.1} parent=59 // pred_fallthru
          _
      $region60: #{tpu_custom_call.1} parent=5 // pred_fallthru
        _
      %p462 = scmp.le.s32.totalorder 1, %s27
      %p463 = scmp.lt.s32.totalorder %s27, 5
      %p464 = pnand %p462, %p463
      %p465 = pneg %p464
      // Predicated region
      $region65: #{tpu_custom_call.1} parent=5 // pred_check
        _
      $region66: #{tpu_custom_call.1} parent=5 // pred_check_branch
        %467 = sbr.rel (%p464) target = $region68
      $region67: #{tpu_custom_call.1} parent=5 // pred_region
        %s468 = ssub.s32 %s27, 1
        %s469 = sand.u32 %s59, 1
        %s470 = scalar_lea.sflag [#allocation7], %s469
        %s471 = sand.u32 %s59, 1
        %s472 = smul.addr %s471, 16
        %s473 = scalar_lea.vmem [#allocation6], %s472
        // Predicated region
        $region69: #{tpu_custom_call.1} parent=67 // pred_check
          %p474 = pneg %p72
        $region70: #{tpu_custom_call.1} parent=67 // pred_check_branch
          %476 = sbr.rel (%p474) target = $region72
        $region71: #{tpu_custom_call.1} parent=67 // pred_region
          %478 = dma.done %s470, 256
        $region72: #{tpu_custom_call.1} parent=67 // pred_fallthru
          _
        // Predicated region
        $region73: #{tpu_custom_call.1} parent=67 // pred_check
          %p479 = pneg %p93
        $region74: #{tpu_custom_call.1} parent=67 // pred_check_branch
          %481 = sbr.rel (%p479) target = $region76
        $region75: #{tpu_custom_call.1} parent=67 // pred_region
          %483 = dma.done [#allocation10], 16
        $region76: #{tpu_custom_call.1} parent=67 // pred_fallthru
          _
        // Predicated region
        $region77: #{tpu_custom_call.1} parent=67 // pred_check
          %p484 = pneg %p135
        $region78: #{tpu_custom_call.1} parent=67 // pred_check_branch
          %486 = sbr.rel (%p484) target = $region80
        $region79: #{tpu_custom_call.1} parent=67 // pred_region
          %488 = dma.done [#allocation10], 512
        $region80: #{tpu_custom_call.1} parent=67 // pred_fallthru
          _
        // Predicated region
        $region81: #{tpu_custom_call.1} parent=67 // pred_check
          %p489 = pneg %p156
        $region82: #{tpu_custom_call.1} parent=67 // pred_check_branch
          %491 = sbr.rel (%p489) target = $region84
        $region83: #{tpu_custom_call.1} parent=67 // pred_region
          %493 = dma.done [#allocation13], 512
        $region84: #{tpu_custom_call.1} parent=67 // pred_fallthru
          _
        // Predicated region
        $region85: #{tpu_custom_call.1} parent=67 // pred_check
          %p494 = pneg %p240
        $region86: #{tpu_custom_call.1} parent=67 // pred_check_branch
          %496 = sbr.rel (%p494) target = $region88
        $region87: #{tpu_custom_call.1} parent=67 // pred_region
          %498 = dma.done [#allocation13], 512
        $region88: #{tpu_custom_call.1} parent=67 // pred_fallthru
          _
        // Predicated region
        $region89: #{tpu_custom_call.1} parent=67 // pred_check
          %p499 = pneg %p282
        $region90: #{tpu_custom_call.1} parent=67 // pred_check_branch
          %501 = sbr.rel (%p499) target = $region92
        $region91: #{tpu_custom_call.1} parent=67 // pred_region
          %503 = dma.done [#allocation16], 512
        $region92: #{tpu_custom_call.1} parent=67 // pred_fallthru
          _
        %s504 = sand.u32 %s59, 1
        %s505 = scalar_lea.sflag [#allocation7], %s504
        %s506 = sand.u32 %s59, 1
        %s507 = smul.addr %s506, 16
        %s508 = scalar_lea.vmem [#allocation6], %s507
        %p509 = pneg %p72
        %p510 = pneg %p69
        %p511 = pneg %p93
        %p512 = pneg %p90
        %p513 = pneg %p114
        %p514 = pneg %p111
        %p515 = pneg %p135
        %p516 = pneg %p132
        %p517 = pneg %p156
        %p518 = pneg %p153
        %p519 = pneg %p177
        %p520 = pneg %p174
        %p521 = pneg %p198
        %p522 = pneg %p195
        %p523 = pneg %p219
        %p524 = pneg %p216
        %p525 = pneg %p240
        %p526 = pneg %p237
        %p527 = pneg %p261
        %p528 = pneg %p258
        %p529 = pneg %p282
        %p530 = pneg %p279
        %p531 = pneg %p303
        %p532 = pneg %p300
        %p533 = pneg %p335
        %p534 = pneg %p332
        %s535 = sand.u32 %s322, 1
        %s536 = scalar_lea.sflag [#allocation8], %s535
        %s537 = sand.u32 %s322, 1
        %s538 = smul.addr %s537, 8
        %s539 = scalar_lea.vmem [#allocation17], %s538
        %s540 = smul.u32 %s38, 2
        %s541 = sadd.s32 %s540, %s39
        %p543 = scmp.eq.s32.totalorder %s39, 0
        // Predicated region
        $region93: #{tpu_custom_call.1} parent=67 // pred_check
          %p544 = pneg %p543
        $region94: #{tpu_custom_call.1} parent=67 // pred_check_branch
          %546 = sbr.rel (%p544) target = $region96
        $region95: #{tpu_custom_call.1} parent=67 // pred_region
          %v547 = vld [vmem:[%s473] sm:$0xff]
          %v548 = vld [vmem:[%s473 + $0x8] sm:$0xff]
          %v549 = vld [vmem:[#allocation9] sm:$0x1]
          %v550 = vld [vmem:[%s2] sm:$0x1]
          %vm551 = vcmask 261120
          %v552 = vsel %vm551, %v547, 0.0
          %553 = vadd.xlane.f32.xlu0 %v552
          %v554 = vpop.xlane.xlu0 %553
          %v555 = vsel %vm551, %v548, 0.0
          %556 = vadd.xlane.f32.xlu0 %v555
          %v557 = vpop.xlane.xlu0 %556
          %v558 = vrcp.pop 32.0
          %v559 = vmul.f32 32.0, %v558
          %v560 = vsub.f32 1.0, %v559
          %v561 = vmul.f32 %v558, %v560
          %v562 = vadd.f32 %v558, %v561
          %vm563 = vweird.f32 %v558
          %v564 = vsel %vm563, %v558, %v562
          %v565 = vmul.f32 %v554, %v564
          %v566 = vmul.f32 %v557, %v564
          %v567 = vsub.f32 %v547, %v565
          %v568 = vsub.f32 %v548, %v566
          %v569 = vmul.f32 %v567, %v567
          %v570 = vmul.f32 %v568, %v568
          %v571 = vsel %vm551, %v569, 0.0
          %572 = vadd.xlane.f32.xlu0 %v571
          %v573 = vpop.xlane.xlu0 %572
          %v574 = vsel %vm551, %v570, 0.0
          %575 = vadd.xlane.f32.xlu0 %v574
          %v576 = vpop.xlane.xlu0 %575
          %v577 = vmul.f32 %v573, %v564
          %v578 = vmul.f32 %v576, %v564
          %v579 = vadd.f32 %v577, 1e-05
          %v580 = vadd.f32 %v578, 1e-05
          %v581 = vrsqrt.pop %v579
          %v582 = vmul.f32 %v581, %v579
          %v583 = vmul.f32 %v582, %v581
          %v584 = vmul.f32 0.5, %v583
          %v585 = vsub.f32 1.5, %v584
          %v586 = vmul.f32 %v581, %v585
          %vm587 = vweird.f32 %v579
          %vm588 = vweird.f32 %v581
          %vm589 = vmor %vm587, %vm588
          %v590 = vsel %vm589, %v581, %v586
          %v591 = vrsqrt.pop %v580
          %v592 = vmul.f32 %v591, %v580
          %v593 = vmul.f32 %v592, %v591
          %v594 = vmul.f32 0.5, %v593
          %v595 = vsub.f32 1.5, %v594
          %v596 = vmul.f32 %v591, %v595
          %vm597 = vweird.f32 %v580
          %vm598 = vweird.f32 %v591
          %vm599 = vmor %vm597, %vm598
          %v600 = vsel %vm599, %v591, %v596
          %v601 = vmul.f32 %v567, %v590
          %v602 = vmul.f32 %v568, %v600
          %v604 = vperm.slane %v549, 0
          %v606 = vmul.f32 %v601, %v604
          %v607 = vmul.f32 %v602, %v604
          %v609 = vperm.slane %v550, 0
          %v611 = vadd.f32 %v606, %v609
          %v612 = vadd.f32 %v607, %v609
          %v613 = vpack.c.bf16 %v612, %v611
          %v614 = vld [vmem:[#allocation11] sm:$0xff]
          %v615 = vld [vmem:[#allocation11 + $0x8] sm:$0xff]
          %v616 = vld [vmem:[#allocation11 + $0x10] sm:$0xff]
          %v617 = vld [vmem:[#allocation11 + $0x18] sm:$0xff]
          %v622 = vunpack.c.l.b16 %v614
          %v623 = vunpack.c.h.b16 %v614
          %v624 = vunpack.c.l.b16 %v615
          %v625 = vunpack.c.h.b16 %v615
          %v626 = vunpack.c.l.b16 %v616
          %v627 = vunpack.c.h.b16 %v616
          %v628 = vunpack.c.l.b16 %v617
          %v629 = vunpack.c.h.b16 %v617
          %v630 = vpack.c.b16 %v624, %v622
          %v631 = vpack.c.b16 %v625, %v623
          %v632 = vpack.c.b16 %v628, %v626
          %v633 = vpack.c.b16 %v629, %v627
          %v639 = vsel %vm551, %v613, 0
          %641 = vmatpush.bf16.msra.mxu0 0
          %642 = vmatpush.bf16.msra.mxu0 0
          %643 = vmatpush.bf16.msra.mxu0 0
          %644 = vmatpush.bf16.msra.mxu0 0
          %645 = vmatpush.bf16.msra.mxu0 0
          %646 = vmatpush.bf16.msra.mxu0 0
          %647 = vmatpush.bf16.msra.mxu0 %v632
          %648 = vmatpush.bf16.msra.mxu0 %v630
          %649 = vmatmul.bf16.gmra.mxu0 %v639
          %v650 = vpop.f32.mrf.mxu0
          %v651 = vadd.f32 0.0, %v650
          %v652 = vpop.f32.mrf.mxu0
          %v653 = vadd.f32 0.0, %v652
          %654 = vdwg.mxu0
          %655 = vmatpush.bf16.msra.mxu0 0
          %656 = vmatpush.bf16.msra.mxu0 0
          %657 = vmatpush.bf16.msra.mxu0 0
          %658 = vmatpush.bf16.msra.mxu0 0
          %659 = vmatpush.bf16.msra.mxu0 0
          %660 = vmatpush.bf16.msra.mxu0 0
          %661 = vmatpush.bf16.msra.mxu0 %v633
          %662 = vmatpush.bf16.msra.mxu0 %v631
          %663 = vmatmul.bf16.gmra.mxu0 %v639
          %v664 = vpop.f32.mrf.mxu0
          %v665 = vadd.f32 0.0, %v664
          %v666 = vpop.f32.mrf.mxu0
          %v667 = vadd.f32 0.0, %v666
          %668 = vdwg.mxu0
          %vm669 = vcmask 523264
          %670 = vst.msk [vmem:[#allocation2] sm:$0xff] %vm669, %v651
          %671 = vst.msk [vmem:[#allocation2 + $0x8] sm:$0xff] %vm669, %v653
          %v672 = vpack.c.bf16 %v651, %v651
          %v673 = vpack.c.bf16 %v653, %v653
          %676 = vrot.lane.b32.xlu0 %v672, 64
          %v677 = vpop.permute.xlu0 %676
          %678 = vrot.lane.b32.xlu0 %v673, 64
          %v679 = vpop.permute.xlu0 %678
          %vm682 = vcmask 519168
          %683 = vst.msk [vmem:[#allocation3] sm:$0xf] %vm682, %v677
          %684 = vst.msk [vmem:[#allocation3 + $0x4] sm:$0xf] %vm682, %v679
          %685 = vst.msk [vmem:[#allocation4] sm:$0xff] %vm669, %v665
          %686 = vst.msk [vmem:[#allocation4 + $0x8] sm:$0xff] %vm669, %v667
          %v687 = vpack.c.bf16 %v665, %v665
          %v688 = vpack.c.bf16 %v667, %v667
          %689 = vst.msk [vmem:[#allocation5] sm:$0xf] %vm682, %v687
          %690 = vst.msk [vmem:[#allocation5 + $0x4] sm:$0xf] %vm682, %v688
        $region96: #{tpu_custom_call.1} parent=67 // pred_fallthru
          _
        %s691 = smul.u32 %s38, 2
        %s692 = sadd.s32 %s691, %s39
        %s693 = smul.u32 %s692, 8
        %s694 = scalar_lea.vmem [#allocation2], %s693
        %v695 = vld [vmem:[%s694] sm:$0xff]
        %v696 = vpack.c.bf16 %v695, %v695
        %s697 = scalar_lea.vmem [#allocation4], %s693
        %v698 = vld [vmem:[%s697] sm:$0xff]
        %v699 = vld [vmem:[#allocation3] sm:$0xf]
        %v700 = vld [vmem:[#allocation3 + $0x4] sm:$0xf]
        %v703 = vunpack.c.l.b16 %v699
        %v704 = vunpack.c.l.b16 %v700
        %v705 = vpack.c.b16 %v704, %v703
        %vm706 = vcmask 523264
        %v708 = vsel %vm706, %v696, 0
        %v711 = vsel %vm706, %v705, 0
        %713 = vmatpush.bf16.xpose.msra.mxu0 0
        %714 = vmatpush.bf16.xpose.msra.mxu0 0
        %715 = vmatpush.bf16.xpose.msra.mxu0 0
        %716 = vmatpush.bf16.xpose.msra.mxu0 0
        %717 = vmatpush.bf16.xpose.msra.mxu0 0
        %718 = vmatpush.bf16.xpose.msra.mxu0 0
        %719 = vmatpush.bf16.xpose.msra.mxu0 0
        %720 = vmatpush.bf16.xpose.msra.mxu0 %v711
        %721 = vmatmul.bf16.gmra.mxu0 %v708
        %v722 = vpop.f32.mrf.mxu0
        %v723 = vadd.f32 0.0, %v722
        %v724 = vpop.f32.mrf.mxu0
        %725 = vdwg.mxu0
        %vm726 = vcmask 130048
        %v727 = vsel %vm726, %v723, -inf
        %728 = vmax.xlane.f32.xlu0 %v727
        %v729 = vpop.xlane.xlu0 %728
        %v730 = vsub.f32 %v723, %v729
        %v731 = vmul.f32 %v730, 1.442695
        %v732 = vpow.pop %v731
        %v733 = vsel %vm726, %v732, 0.0
        %734 = vadd.xlane.f32.xlu0 %v733
        %v735 = vpop.xlane.xlu0 %734
        %v736 = vrcp.pop %v735
        %v737 = vmul.f32 %v732, %v736
        %v738 = vpack.c.bf16 %v737, %v737
        %v739 = vld [vmem:[#allocation5] sm:$0xf]
        %v740 = vld [vmem:[#allocation5 + $0x4] sm:$0xf]
        %v743 = vunpack.c.l.b16 %v739
        %v744 = vunpack.c.l.b16 %v740
        %v745 = vpack.c.b16 %v744, %v743
        %v748 = vsel %vm726, %v738, 0
        %750 = vmatpush.bf16.msra.mxu0 0
        %751 = vmatpush.bf16.msra.mxu0 0
        %752 = vmatpush.bf16.msra.mxu0 0
        %753 = vmatpush.bf16.msra.mxu0 0
        %754 = vmatpush.bf16.msra.mxu0 0
        %755 = vmatpush.bf16.msra.mxu0 0
        %756 = vmatpush.bf16.msra.mxu0 0
        %757 = vmatpush.bf16.msra.mxu0 %v745
        %758 = vmatmul.bf16.gmra.mxu0 %v748
        %v759 = vpop.f32.mrf.mxu0
        %v760 = vadd.f32 0.0, %v759
        %v761 = vpop.f32.mrf.mxu0
        %762 = vdwg.mxu0
        %v763 = vpack.c.bf16 %v760, %v760
        %v764 = vld [vmem:[#allocation12] sm:$0xf]
        %v765 = vld [vmem:[#allocation12 + $0x4] sm:$0xf]
        %v766 = vld [vmem:[#allocation12 + $0x8] sm:$0xf]
        %v767 = vld [vmem:[#allocation12 + $0xc] sm:$0xf]
        %v768 = vld [vmem:[#allocation12 + $0x10] sm:$0xf]
        %v769 = vld [vmem:[#allocation12 + $0x14] sm:$0xf]
        %v770 = vld [vmem:[#allocation12 + $0x18] sm:$0xf]
        %v771 = vld [vmem:[#allocation12 + $0x1c] sm:$0xf]
        %v772 = vld [vmem:[%s5] sm:$0x1]
        %v774 = vperm.slane %v772, 0
        %v784 = vunpack.c.l.b16 %v764
        %v785 = vunpack.c.l.b16 %v765
        %v786 = vunpack.c.l.b16 %v766
        %v787 = vunpack.c.l.b16 %v767
        %v788 = vunpack.c.l.b16 %v768
        %v789 = vunpack.c.l.b16 %v769
        %v790 = vunpack.c.l.b16 %v770
        %v791 = vunpack.c.l.b16 %v771
        %v792 = vpack.c.b16 %v785, %v784
        %v793 = vpack.c.b16 %v787, %v786
        %v794 = vpack.c.b16 %v789, %v788
        %v795 = vpack.c.b16 %v791, %v790
        %v801 = vsel %vm706, %v763, 0
        %803 = vmatpush.bf16.msra.mxu0 0
        %804 = vmatpush.bf16.msra.mxu0 0
        %805 = vmatpush.bf16.msra.mxu0 0
        %806 = vmatpush.bf16.msra.mxu0 0
        %807 = vmatpush.bf16.msra.mxu0 %v795
        %808 = vmatpush.bf16.msra.mxu0 %v794
        %809 = vmatpush.bf16.msra.mxu0 %v793
        %810 = vmatpush.bf16.msra.mxu0 %v792
        %811 = vmatmul.bf16.gmra.mxu0 %v801
        %v812 = vpop.f32.mrf.mxu0
        %v813 = vadd.f32 %v774, %v812
        %v814 = vpop.f32.mrf.mxu0
        %815 = vdwg.mxu0
        %v816 = vadd.f32 %v698, %v813
        %v817 = vld [vmem:[%s6] sm:$0x1]
        %v818 = vld [vmem:[%s7] sm:$0x1]
        %v819 = vsel %vm706, %v816, 0.0
        %820 = vadd.xlane.f32.xlu0 %v819
        %v821 = vpop.xlane.xlu0 %820
        %v822 = vrcp.pop 64.0
        %v823 = vmul.f32 64.0, %v822
        %v824 = vsub.f32 1.0, %v823
        %v825 = vmul.f32 %v822, %v824
        %v826 = vadd.f32 %v822, %v825
        %vm827 = vweird.f32 %v822
        %v828 = vsel %vm827, %v822, %v826
        %v829 = vmul.f32 %v821, %v828
        %v830 = vsub.f32 %v816, %v829
        %v831 = vmul.f32 %v830, %v830
        %v832 = vsel %vm706, %v831, 0.0
        %833 = vadd.xlane.f32.xlu0 %v832
        %v834 = vpop.xlane.xlu0 %833
        %v835 = vmul.f32 %v834, %v828
        %v836 = vadd.f32 %v835, 1e-05
        %v837 = vrsqrt.pop %v836
        %v838 = vmul.f32 %v837, %v836
        %v839 = vmul.f32 %v838, %v837
        %v840 = vmul.f32 0.5, %v839
        %v841 = vsub.f32 1.5, %v840
        %v842 = vmul.f32 %v837, %v841
        %vm843 = vweird.f32 %v836
        %vm844 = vweird.f32 %v837
        %vm845 = vmor %vm843, %vm844
        %v846 = vsel %vm845, %v837, %v842
        %v847 = vmul.f32 %v830, %v846
        %v849 = vperm.slane %v817, 0
        %v851 = vmul.f32 %v847, %v849
        %v853 = vperm.slane %v818, 0
        %v855 = vadd.f32 %v851, %v853
        %v856 = vpack.c.bf16 %v855, %v855
        %v857 = vld [vmem:[#allocation14] sm:$0xf]
        %v858 = vld [vmem:[#allocation14 + $0x4] sm:$0xf]
        %v859 = vld [vmem:[#allocation14 + $0x8] sm:$0xf]
        %v860 = vld [vmem:[#allocation14 + $0xc] sm:$0xf]
        %v861 = vld [vmem:[#allocation14 + $0x10] sm:$0xf]
        %v862 = vld [vmem:[#allocation14 + $0x14] sm:$0xf]
        %v863 = vld [vmem:[#allocation14 + $0x18] sm:$0xf]
        %v864 = vld [vmem:[#allocation14 + $0x1c] sm:$0xf]
        %v865 = vld [vmem:[%s9] sm:$0x1]
        %v867 = vperm.slane %v865, 0
        %v877 = vunpack.c.l.b16 %v857
        %v878 = vunpack.c.l.b16 %v858
        %v879 = vunpack.c.l.b16 %v859
        %v880 = vunpack.c.l.b16 %v860
        %v881 = vunpack.c.l.b16 %v861
        %v882 = vunpack.c.l.b16 %v862
        %v883 = vunpack.c.l.b16 %v863
        %v884 = vunpack.c.l.b16 %v864
        %v885 = vpack.c.b16 %v878, %v877
        %v886 = vpack.c.b16 %v880, %v879
        %v887 = vpack.c.b16 %v882, %v881
        %v888 = vpack.c.b16 %v884, %v883
        %v894 = vsel %vm706, %v856, 0
        %896 = vmatpush.bf16.msra.mxu0 0
        %897 = vmatpush.bf16.msra.mxu0 0
        %898 = vmatpush.bf16.msra.mxu0 0
        %899 = vmatpush.bf16.msra.mxu0 0
        %900 = vmatpush.bf16.msra.mxu0 %v888
        %901 = vmatpush.bf16.msra.mxu0 %v887
        %902 = vmatpush.bf16.msra.mxu0 %v886
        %903 = vmatpush.bf16.msra.mxu0 %v885
        %904 = vmatmul.bf16.gmra.mxu0 %v894
        %v905 = vpop.f32.mrf.mxu0
        %v906 = vadd.f32 %v867, %v905
        %v907 = vpop.f32.mrf.mxu0
        %908 = vdwg.mxu0
        %v909 = vmul.f32 %v906, 0.5
        %v910 = vmul.f32 %v906, 0.70710677
        %v911 = vmul.f32 %v910, %v910
        %v912 = vmin.f32 16.0, %v911
        %v913 = vmul.f32 %v912, 2.1237322e-06
        %v914 = vadd.f32 %v913, 0.00028619796
        %v915 = vmul.f32 %v912, %v914
        %v916 = vadd.f32 %v915, 0.0036580483
        %v917 = vmul.f32 %v912, %v916
        %v918 = vadd.f32 %v917, 0.05243302
        %v919 = vmul.f32 %v912, %v918
        %v920 = vadd.f32 %v919, 0.18741608
        %v921 = vmul.f32 %v912, %v920
        %v922 = vadd.f32 %v921, 1.1283791
        %v923 = vmul.f32 %v910, %v922
        %v924 = vmul.f32 %v912, 3.8918573e-05
        %v925 = vadd.f32 %v924, 0.001143296
        %v926 = vmul.f32 %v912, %v925
        %v927 = vadd.f32 %v926, 0.014752088
        %v928 = vmul.f32 %v912, %v927
        %v929 = vadd.f32 %v928, 0.112945676
        %v930 = vmul.f32 %v912, %v929
        %v931 = vadd.f32 %v930, 0.4994258
        %v932 = vmul.f32 %v912, %v931
        %v933 = vadd.f32 %v932, 1.0
        %v934 = vrcp.pop %v933
        %v935 = vmul.f32 %v933, %v934
        %v936 = vsub.f32 1.0, %v935
        %v937 = vmul.f32 %v934, %v936
        %v938 = vadd.f32 %v934, %v937
        %vm939 = vweird.f32 %v933
        %vm940 = vweird.f32 %v934
        %vm941 = vmor %vm939, %vm940
        %v942 = vsel %vm941, %v934, %v938
        %v943 = vand.u32 2147483647, %v933
        %vm944 = vcmp.eq.f32.partialorder %v943, 8.507059e+37
        %v945 = vand.u32 %v933, 2147483648
        %v946 = vor.u32 1.1754944e-38, %v945
        %v947 = vsel %vm944, %v946, %v942
        %v948 = vmul.f32 %v923, %v947
        %v949 = vmin.f32 %v948, 1.0
        %v950 = vmax.f32 %v949, -1.0
        %v951 = vadd.f32 %v950, 1.0
        %v952 = vmul.f32 %v909, %v951
        %v953 = vpack.c.bf16 %v952, %v952
        %v954 = vld [vmem:[#allocation15] sm:$0xf]
        %v955 = vld [vmem:[#allocation15 + $0x4] sm:$0xf]
        %v956 = vld [vmem:[#allocation15 + $0x8] sm:$0xf]
        %v957 = vld [vmem:[#allocation15 + $0xc] sm:$0xf]
        %v958 = vld [vmem:[#allocation15 + $0x10] sm:$0xf]
        %v959 = vld [vmem:[#allocation15 + $0x14] sm:$0xf]
        %v960 = vld [vmem:[#allocation15 + $0x18] sm:$0xf]
        %v961 = vld [vmem:[#allocation15 + $0x1c] sm:$0xf]
        %v962 = vld [vmem:[%s11] sm:$0x1]
        %v964 = vperm.slane %v962, 0
        %v974 = vunpack.c.l.b16 %v954
        %v975 = vunpack.c.l.b16 %v955
        %v976 = vunpack.c.l.b16 %v956
        %v977 = vunpack.c.l.b16 %v957
        %v978 = vunpack.c.l.b16 %v958
        %v979 = vunpack.c.l.b16 %v959
        %v980 = vunpack.c.l.b16 %v960
        %v981 = vunpack.c.l.b16 %v961
        %v982 = vpack.c.b16 %v975, %v974
        %v983 = vpack.c.b16 %v977, %v976
        %v984 = vpack.c.b16 %v979, %v978
        %v985 = vpack.c.b16 %v981, %v980
        %v991 = vsel %vm706, %v953, 0
        %993 = vmatpush.bf16.msra.mxu0 0
        %994 = vmatpush.bf16.msra.mxu0 0
        %995 = vmatpush.bf16.msra.mxu0 0
        %996 = vmatpush.bf16.msra.mxu0 0
        %997 = vmatpush.bf16.msra.mxu0 %v985
        %998 = vmatpush.bf16.msra.mxu0 %v984
        %999 = vmatpush.bf16.msra.mxu0 %v983
        %1000 = vmatpush.bf16.msra.mxu0 %v982
        %1001 = vmatmul.bf16.gmra.mxu0 %v991
        %v1002 = vpop.f32.mrf.mxu0
        %v1003 = vadd.f32 %v964, %v1002
        %v1004 = vpop.f32.mrf.mxu0
        %1005 = vdwg.mxu0
        %v1006 = vadd.f32 %v816, %v1003
        %1007 = vst.msk [vmem:[%s539] sm:$0xff] %vm706, %v1006
        %s1008 = sand.u32 %s322, 1
        %s1009 = scalar_lea.sflag [#allocation8], %s1008
        %s1010 = sand.u32 %s322, 1
        %s1011 = smul.addr %s1010, 8
        %s1012 = scalar_lea.vmem [#allocation17], %s1011
        // Predicated region
        $region97: #{tpu_custom_call.1} parent=67 // pred_check
          %p1013 = pneg %p332
        $region98: #{tpu_custom_call.1} parent=67 // pred_check_branch
          %1015 = sbr.rel (%p1013) target = $region100
        $region99: #{tpu_custom_call.1} parent=67 // pred_region
          %s1016 = smul.u32 %s38, 2
          %s1017 = sadd.s32 %s1016, %s39
          %1019 = vsyncadd %s1009, 0
          %s1020 = smul.addr %s37, 2
          %s1021 = sadd.s32 %s1017, %s1020
          %s1022 = smul.addr %s1021, 8
          %s1023 = scalar_lea.hbm %s12, %s1022
          %s1025 = sshll.u32 %s1012, 4
          %s1026 = int_to_ptr.vmem [resolvable:$true] %s1025
          %s1027 = sshll.u32 %s1023, 4
          %s1028 = int_to_ptr.hbm [resolvable:$true] %s1027
          %1030 = dma.vmem_to_hbm [thread:$0]  %s1026, 128, %s1028, %s1009
        $region100: #{tpu_custom_call.1} parent=67 // pred_fallthru
          _
      $region68: #{tpu_custom_call.1} parent=5 // pred_fallthru
        _
      %p1031 = scmp.le.s32.totalorder 2, %s27
      // Predicated region
      $region101: #{tpu_custom_call.1} parent=5 // pred_check
        %p1032 = pneg %p1031
      $region102: #{tpu_custom_call.1} parent=5 // pred_check_branch
        %1034 = sbr.rel (%p1032) target = $region104
      $region103: #{tpu_custom_call.1} parent=5 // pred_region
        %s1035 = ssub.s32 %s27, 2
        // Predicated region
        $region105: #{tpu_custom_call.1} parent=103 // pred_check
          %p1036 = pneg %p338
        $region106: #{tpu_custom_call.1} parent=103 // pred_check_branch
          %1038 = sbr.rel (%p1036) target = $region108
        $region107: #{tpu_custom_call.1} parent=103 // pred_region
          %s1039 = sand.u32 %s323, 1
          %s1040 = scalar_lea.sflag [#allocation8], %s1039
          %s1041 = sand.u32 %s323, 1
          %s1042 = smul.addr %s1041, 8
          %s1043 = scalar_lea.vmem [#allocation17], %s1042
          %1045 = dma.done %s1040, 128
        $region108: #{tpu_custom_call.1} parent=103 // pred_fallthru
          _
      $region104: #{tpu_custom_call.1} parent=5 // pred_fallthru
        _
    $region6: #{tpu_custom_call.1} parent=1 // loop_footer
      %s31 = sadd.s32 1, %s27
    $region7: #{tpu_custom_call.1} parent=1 // loop_footer_branch
      %26 = sbr.rel target = $region3
    $region8: #{tpu_custom_call.1} parent=1 // loop_exit
      _
    %1046 = vsyncpa [#allocation7], 1
    %s1047 = scalar_lea.sflag [#allocation7], 1
    %1048 = vsyncpa %s1047, 1
    %1049 = vsyncpa [#allocation10], 1
    %1050 = vsyncpa [#allocation13], 1
    %1051 = vsyncpa [#allocation16], 1
    %1052 = vsyncpa [#allocation8], 1
    %s1053 = scalar_lea.sflag [#allocation8], 1
    %1054 = vsyncpa %s1053, 1

</llo_original>
